<compile_context>
chip_gen: v5e
topology: v5e:2x2
jax: 0.10.0
libtpu: 0.0.40
codegen_flags: <defaults>
</compile_context>

<pallas_src>
import jax
import jax.numpy as jnp
from jax.experimental import pallas as pl
from jax.experimental.pallas import tpu as pltpu


def _mean_pooling_kernel(adj_ref, emb_ref, out_ref, w_acc):
    """Streaming row-block reduction for mean pooling.

    adj_ref : (TM, N) current row-block of the adjacency (streamed / pipelined)
    emb_ref : (N, D)  embeddings, resident across the grid (same block index)
    out_ref : (1, D)  pooled output, written once on the last grid step
    w_acc   : (1, N)  VMEM scratch accumulator for the weight vector
    """
    i = pl.program_id(0)
    n_total = emb_ref.shape[0]  # static N

    @pl.when(i == 0)
    def _():
        w_acc[...] = jnp.zeros_like(w_acc)

    adj = adj_ref[...]                                   # (TM, N) f32
    row_sum = jnp.sum(adj, axis=1, keepdims=True)        # (TM, 1) node degrees

    # Guarded EUP approx reciprocal (separate bundle slot -> essentially free);
    # zero-degree rows -> 0, matching normalize()'s 1/0 -> 0 behavior.  The
    # mean's 1/N factor is folded in here (compile-time constant).
    r_inv = jnp.where(row_sum > 0.0,
                      pl.reciprocal(row_sum, approx=True),
                      0.0) * (1.0 / n_total)             # (TM, 1)

    # Partial weight vector:  w += sum_i (r_inv[i]/N) * A[i, :]   -> (1, N)
    # VPU scale + sublane reduce; O(TM*N), same order as the bytes streamed,
    # so the VALU never becomes the bottleneck (HBM BW is).
    w_acc[...] += jnp.sum(adj * r_inv, axis=0, keepdims=True)

    @pl.when(i == pl.num_programs(0) - 1)
    def _():
        # Single (1, N) @ (N, D) matvec on the MXU; output written exactly once.
        out_ref[...] = jnp.dot(
            w_acc[...], emb_ref[...], preferred_element_type=jnp.float32
        ).astype(out_ref.dtype)


def mean_pooling(adjacency: jax.Array, embeddings: jax.Array,
                 *, block_rows: int = 256) -> jax.Array:
    """adjacency: (N, N) f32, embeddings: (N, D) f32 -> (D,) f32."""
    N, D = embeddings.shape
    assert adjacency.shape == (N, N)

    # Row-block size: stream TM rows of A per grid step (double-buffered by
    # Pallas).  2 * TM * N * 4B stays well under the scoped VMEM limit on every
    # generation (incl. v7x's 64 MiB VMEM).  Fall back to a single full block
    # when N is not an exact multiple (block then equals the full array dims,
    # so the (8, 128) tiling constraint is still satisfied).
    tm = block_rows if (block_rows <= N and N % block_rows == 0) else N
    grid = (N // tm,)

    out = pl.pallas_call(
        _mean_pooling_kernel,
        out_shape=jax.ShapeDtypeStruct((1, D), jnp.float32),
        grid_spec=pltpu.PrefetchScalarGridSpec(
            num_scalar_prefetch=0,
            grid=grid,
            in_specs=[
                # adjacency: streamed row blocks (reduction axis)
                pl.BlockSpec((tm, N), lambda i: (i, 0)),
                # embeddings: same block every step -> DMA'd once, stays resident
                pl.BlockSpec((N, D), lambda i: (0, 0)),
            ],
            out_specs=pl.BlockSpec((1, D), lambda i: (0, 0)),
            scratch_shapes=[pltpu.VMEM((1, N), jnp.float32)],  # weight accumulator
        ),
        compiler_params=pltpu.CompilerParams(
            dimension_semantics=("arbitrary",),   # row-block axis is a reduction
        ),
    )(adjacency, embeddings)
    return out[0]  # (D,)


def _reference(adjacency, embeddings):
    row_sum = jnp.sum(adjacency, axis=1, keepdims=True)
    r_inv = jnp.where(row_sum > 0, 1.0 / row_sum, 0.0)
    norm_adj = adjacency * r_inv
    node_emb = norm_adj @ embeddings
    return jnp.mean(node_emb, axis=0)


if __name__ == "__main__":
    key = jax.random.PRNGKey(0)
    k_adj, k_emb = jax.random.split(key)

    # Small but tile-friendly shapes: N nodes, D hidden dim (D multiple of 128
    # for a lane-dense output store; N // block_rows = 2 grid steps exercise
    # the streaming reduction + accumulator init/finalize paths).
    N, D = 256, 128

    # Deterministic synthetic 0/1 adjacency, no self loops.
    # NOTE(synk): the n_sample neighbor subsampling in __init__ is init-time
    # graph construction (python random.sample), not forward-pass compute.
    adj = (jax.random.uniform(k_adj, (N, N)) > 0.5).astype(jnp.float32)
    adj = adj * (1.0 - jnp.eye(N, dtype=jnp.float32))
    adj = adj.at[0].set(0.0)  # include a zero-degree row to exercise the guard

    emb = jax.random.normal(k_emb, (N, D), dtype=jnp.float32)

    result = mean_pooling(adj, emb, block_rows=128)
    jax.block_until_ready(result)

    expected = _reference(adj, emb)
    assert result.shape == (D,)
    # Slightly relaxed tolerance: row-degree reciprocal uses the EUP approx
    # reciprocal; observed error is ~1e-4 relative at these shapes.
    assert jnp.allclose(result, expected, atol=2e-3, rtol=2e-3), (
        float(jnp.max(jnp.abs(result - expected))))

    print("KERNEL_OK")
</pallas_src>

<mosaic_0001>
module attributes {stable_mosaic.version = 11 : i64} {
  func.func @_mean_pooling_kernel(%arg0: i32, %arg1: memref<128x256xf32, #tpu.memory_space<vmem>>, %arg2: memref<256x128xf32, #tpu.memory_space<vmem>>, %arg3: memref<1x128xf32, #tpu.memory_space<vmem>>, %arg4: memref<1x256xf32, #tpu.memory_space<vmem>>) attributes {dimension_semantics = [#tpu.dimension_semantics<arbitrary>], iteration_bounds = array<i64: 2>, scalar_prefetch = 0 : i64, scratch_operands = 1 : i64, tpu.core_type = #tpu.core_type<tc>, window_params = [{transform_indices = @transform_0, window_bounds = array<i64: 128, 256>}, {pipeline_mode = #tpu.pipeline_mode<synchronous>, transform_indices = @transform_1, window_bounds = array<i64: 256, 128>}, {pipeline_mode = #tpu.pipeline_mode<synchronous>, transform_indices = @transform_2, window_bounds = array<i64: 1, 128>}]} {
    %c0_i32 = arith.constant 0 : i32
    %0 = arith.cmpi eq, %arg0, %c0_i32 : i32
    %1 = arith.extui %0 : i1 to i32
    %c0_i32_0 = arith.constant 0 : i32
    %2 = arith.cmpi ne, %1, %c0_i32_0 : i32
    scf.if %2 {
      %cst_11 = arith.constant 0.000000e+00 : f32
      %23 = vector.broadcast %cst_11 : f32 to vector<1x256xf32>
      %c0_12 = arith.constant 0 : index
      %c0_13 = arith.constant 0 : index
      %24 = vector.load %arg4[%c0_12, %c0_13] : memref<1x256xf32, #tpu.memory_space<vmem>>, vector<1x256xf32>
      tpu.vector_store %arg4[%c0_12, %c0_13], %23 {strides = array<i32>} : memref<1x256xf32, #tpu.memory_space<vmem>>, vector<1x256xf32>,
    } else {
    }
    %c0 = arith.constant 0 : index
    %c0_1 = arith.constant 0 : index
    %3 = vector.load %arg1[%c0, %c0_1] : memref<128x256xf32, #tpu.memory_space<vmem>>, vector<128x256xf32>
    %cst = arith.constant dense<0.000000e+00> : vector<128xf32>
    %4 = vector.multi_reduction <add>, %3, %cst [1] : vector<128x256xf32> to vector<128xf32>
    %5 = vector.shape_cast %4 : vector<128xf32> to vector<128x1xf32>
    %cst_2 = arith.constant 0.000000e+00 : f32
    %6 = vector.broadcast %cst_2 : f32 to vector<128x1xf32>
    %7 = arith.cmpf ogt, %5, %6 : vector<128x1xf32>
    %8 = tpu.reciprocal %5 {approx = true} : vector<128x1xf32> -> vector<128x1xf32>
    %cst_3 = arith.constant 0.000000e+00 : f32
    %9 = vector.broadcast %cst_3 : f32 to vector<128x1xf32>
    %10 = arith.select %7, %8, %9 : vector<128x1xi1>, vector<128x1xf32>
    %cst_4 = arith.constant 3.906250e-03 : f32
    %11 = vector.broadcast %cst_4 : f32 to vector<128x1xf32>
    %12 = arith.mulf %10, %11 : vector<128x1xf32>
    %c0_5 = arith.constant 0 : index
    %c0_6 = arith.constant 0 : index
    %13 = vector.load %arg4[%c0_5, %c0_6] : memref<1x256xf32, #tpu.memory_space<vmem>>, vector<1x256xf32>
    %14 = vector.broadcast %12 : vector<128x1xf32> to vector<128x256xf32>
    %15 = arith.mulf %3, %14 : vector<128x256xf32>
    %cst_7 = arith.constant dense<0.000000e+00> : vector<256xf32>
    %16 = vector.multi_reduction <add>, %15, %cst_7 [0] : vector<128x256xf32> to vector<256xf32>
    %17 = vector.shape_cast %16 : vector<256xf32> to vector<1x256xf32>
    %18 = arith.addf %13, %17 : vector<1x256xf32>
    %c0_8 = arith.constant 0 : index
    %c0_9 = arith.constant 0 : index
    %19 = vector.load %arg4[%c0_8, %c0_9] : memref<1x256xf32, #tpu.memory_space<vmem>>, vector<1x256xf32>
    tpu.vector_store %arg4[%c0_8, %c0_9], %18 {strides = array<i32>} : memref<1x256xf32, #tpu.memory_space<vmem>>, vector<1x256xf32>,
    %c1_i32 = arith.constant 1 : i32
    %20 = arith.cmpi eq, %arg0, %c1_i32 : i32
    %21 = arith.extui %20 : i1 to i32
    %c0_i32_10 = arith.constant 0 : i32
    %22 = arith.cmpi ne, %21, %c0_i32_10 : i32
    scf.if %22 {
      %c0_11 = arith.constant 0 : index
      %c0_12 = arith.constant 0 : index
      %23 = vector.load %arg4[%c0_11, %c0_12] : memref<1x256xf32, #tpu.memory_space<vmem>>, vector<1x256xf32>
      %c0_13 = arith.constant 0 : index
      %c0_14 = arith.constant 0 : index
      %24 = vector.load %arg2[%c0_13, %c0_14] : memref<256x128xf32, #tpu.memory_space<vmem>>, vector<256x128xf32>
      %cst_15 = arith.constant dense<0.000000e+00> : vector<1x128xf32>
      %25 = tpu.matmul %23, %24, %cst_15 {dimension_numbers = #tpu.dot_dimension_numbers<[1], [0], [0], [1], [0, 0, 1, 1], [], []>} : vector<1x256xf32>, vector<256x128xf32>, vector<1x128xf32> -> vector<1x128xf32>
      %c0_16 = arith.constant 0 : index
      %c0_17 = arith.constant 0 : index
      %26 = vector.load %arg3[%c0_16, %c0_17] : memref<1x128xf32, #tpu.memory_space<vmem>>, vector<1x128xf32>
      tpu.vector_store %arg3[%c0_16, %c0_17], %25 {strides = array<i32>} : memref<1x128xf32, #tpu.memory_space<vmem>>, vector<1x128xf32>,
    } else {
    }
    return
  }
  func.func @transform_0(%arg0: i32) -> (i32, i32) {
    %c0_i32 = arith.constant 0 : i32
    %c0_i32_0 = arith.constant 0 : i32
    return %arg0, %c0_i32 : i32, i32
  }
  func.func @transform_1(%arg0: i32) -> (i32, i32) {
    %c0_i32 = arith.constant 0 : i32
    %c0_i32_0 = arith.constant 0 : i32
    %c0_i32_1 = arith.constant 0 : i32
    return %c0_i32, %c0_i32_0 : i32, i32
  }
  func.func @transform_2(%arg0: i32) -> (i32, i32) {
    %c0_i32 = arith.constant 0 : i32
    %c0_i32_0 = arith.constant 0 : i32
    %c0_i32_1 = arith.constant 0 : i32
    return %c0_i32, %c0_i32_0 : i32, i32
  }
}

</mosaic_0001>

<llo_original>
// kernel: tpu_custom_call.1
$region0: #{tpu_custom_call.1}
  #allocation0 [shape = 'u32[]', space=smem, size = 0x4, offset = 0x4, fixed_abs, tag = 'smem constant byte address 0x4 - core index']
  #allocation1 [shape = 'u32[72,128]{1,0:T(1,128)}', space=vmem, size = 0x9000, scoped, tag = 'internal scratch']
  #allocation2 [shape = 'f32[1,256]{1,0:T(1,128)}', space=vmem, size = 0x400, scoped, tag = 'scratch operand']
  %s0 = inlined_call_operand.hbm [shape: f32[256,256], index: 0, kind: input, shape index: {}]
  %s1 = inlined_call_operand.hbm [shape: f32[256,128], index: 1, kind: input, shape index: {}]
  %s2 = inlined_call_operand.hbm [shape: f32[1,128], index: 2, kind: output, shape index: {}]
  %s3 = sld [smem:[#allocation0]]
  $region57: #{tpu_custom_call.1} parent=0
    _
  %s5 = ssub.s32 1, %s3
  %s6 = scalar_select 0, %s5, %s3
  $region1: #{tpu_custom_call.1} parent=0
    #allocation3 [shape = 'u8[262144]{0}', space=vmem, size = 0x40000, scoped, tag = 'input window, operand 0']
    #allocation4 [shape = 's32[2]{0}', space=sflag, size = 0x8, scoped, tag = 'scoped memory for tpu_custom_call.1']
    #allocation5 [shape = 's32[2]{0}', space=sflag, size = 0x8, scoped, tag = 'scoped memory for tpu_custom_call.1']
    #allocation6 [shape = 'u8[131072]{0}', space=vmem, size = 0x20000, scoped, tag = 'input window, operand 1, single buffered']
    #allocation7 [shape = 's32[1]{0}', space=sflag, size = 0x4, scoped, tag = 'scoped memory for tpu_custom_call.1']
    #allocation8 [shape = 'u8[512]{0}', space=vmem, size = 0x400, scoped, tag = 'output window, operand 0, single buffered']
    %7 = vsyncpa [#allocation4], 0
    %s8 = scalar_lea.sflag [#allocation4], 1
    %9 = vsyncpa %s8, 0
    %10 = vsyncpa [#allocation7], 0
    %11 = vsyncpa [#allocation5], 0
    loop: start=0, step=1, limit=4
    $region2: #{tpu_custom_call.1} parent=1 // loop_pre_header
      _
    $region3: #{tpu_custom_call.1} parent=1 // loop_header
      %s13 = sphi 0, %s17
      %p14 = scmp.ge.s32.totalorder %s13, 4
      %s23 = sphi 0, %s25
      %s26 = sphi 0, %s23
      %s27 = sphi 0, %s26
      %s43 = sphi 0, %s27
      %s47 = sphi 0, %s47
      %s49 = sphi 0, %s47
      %s50 = sphi 0, %s49
      %s64 = sphi 0, %s50
      %s68 = sphi 0, %s68
      %s70 = sphi 0, %s68
      %s71 = sphi 0, %s70
      %s85 = sphi 0, %s71
    $region4: #{tpu_custom_call.1} parent=1 // loop_header_branch
      %16 = sbr.rel (%p14) target = $region8
    $region5: #{tpu_custom_call.1} parent=1 // loop_body
      %s18 = ssub.s32 %s13, 1
      %s19 = ssub.s32 %s13, 2
      %s20 = sadd.s32 %s13, 1
      %s21 = ssub.s32 %s13, %s20
      %p22 = scmp.eq.s32.totalorder %s21, 0
      %s24 = sadd.s32 %s23, 1
      %s25 = scalar_select %p22, %s23, %s24
      %p28 = pneg %p22
      %p29 = scmp.eq.s32.totalorder %s13, 1
      %p30 = por %p28, %p29
      %p31 = scmp.ne.s32.totalorder %s23, %s26
      %p32 = scmp.eq.s32.totalorder %s13, 0
      %p33 = por %p31, %p32
      %p34 = scmp.ne.s32.totalorder %s23, %s26
      %p35 = scmp.eq.s32.totalorder %s18, 1
      %p36 = por %p34, %p35
      %p37 = scmp.ne.s32.totalorder %s26, %s27
      %p38 = scmp.eq.s32.totalorder %s18, 0
      %p39 = por %p37, %p38
      %p40 = scmp.ne.s32.totalorder %s26, %s27
      %p41 = scmp.eq.s32.totalorder %s19, 1
      %p42 = por %p40, %p41
      %p44 = scmp.ne.s32.totalorder %s27, %s43
      %p45 = scmp.eq.s32.totalorder %s19, 0
      %p46 = por %p44, %p45
      %s48 = sadd.s32 %s47, 1
      %p51 = scmp.eq.s32.totalorder %s13, 1
      %p52 = scmp.ne.s32.totalorder %s47, %s49
      %p53 = scmp.eq.s32.totalorder %s13, 0
      %p54 = por %p52, %p53
      %p55 = scmp.ne.s32.totalorder %s47, %s49
      %p56 = scmp.eq.s32.totalorder %s18, 1
      %p57 = por %p55, %p56
      %p58 = scmp.ne.s32.totalorder %s49, %s50
      %p59 = scmp.eq.s32.totalorder %s18, 0
      %p60 = por %p58, %p59
      %p61 = scmp.ne.s32.totalorder %s49, %s50
      %p62 = scmp.eq.s32.totalorder %s19, 1
      %p63 = por %p61, %p62
      %p65 = scmp.ne.s32.totalorder %s50, %s64
      %p66 = scmp.eq.s32.totalorder %s19, 0
      %p67 = por %p65, %p66
      %s69 = sadd.s32 %s68, 1
      %p72 = scmp.eq.s32.totalorder %s13, 1
      %p73 = scmp.ne.s32.totalorder %s68, %s70
      %p74 = scmp.eq.s32.totalorder %s13, 0
      %p75 = por %p73, %p74
      %p76 = scmp.ne.s32.totalorder %s68, %s70
      %p77 = scmp.eq.s32.totalorder %s18, 1
      %p78 = por %p76, %p77
      %p79 = scmp.ne.s32.totalorder %s70, %s71
      %p80 = scmp.eq.s32.totalorder %s18, 0
      %p81 = por %p79, %p80
      %p82 = scmp.ne.s32.totalorder %s70, %s71
      %p83 = scmp.eq.s32.totalorder %s19, 1
      %p84 = por %p82, %p83
      %p86 = scmp.ne.s32.totalorder %s71, %s85
      %p87 = scmp.eq.s32.totalorder %s19, 0
      %p88 = por %p86, %p87
      %p89 = scmp.le.s32.totalorder 1, %s13
      %p90 = scmp.lt.s32.totalorder %s13, 3
      %p91 = pnand %p89, %p90
      %p92 = pneg %p91
      // Predicated region
      $region9: #{tpu_custom_call.1} parent=5 // pred_check
        _
      $region10: #{tpu_custom_call.1} parent=5 // pred_check_branch
        %94 = sbr.rel (%p91) target = $region12
      $region11: #{tpu_custom_call.1} parent=5 // pred_region
        %s95 = ssub.s32 %s13, 1
        // Predicated region
        $region13: #{tpu_custom_call.1} parent=11 // pred_check
          %p96 = pneg %p60
        $region14: #{tpu_custom_call.1} parent=11 // pred_check_branch
          %98 = sbr.rel (%p96) target = $region16
        $region15: #{tpu_custom_call.1} parent=11 // pred_region
          %100 = vsyncadd [#allocation7], 0
          %s101 = sshll.u32 %s1, 4
          %s102 = int_to_ptr.hbm [resolvable:$true] %s101
          %s103 = sshll.u32 [#allocation6], 4
          %s104 = int_to_ptr.vmem [resolvable:$true] %s103
          %109 = dma.hbm_to_vmem [thread:$0]  %s102, 4096, %s104, [#allocation7], 128, 128, 8
        $region16: #{tpu_custom_call.1} parent=11 // pred_fallthru
          _
      $region12: #{tpu_custom_call.1} parent=5 // pred_fallthru
        _
      %p110 = scmp.lt.s32.totalorder %s13, 2
      // Predicated region
      $region17: #{tpu_custom_call.1} parent=5 // pred_check
        %p111 = pneg %p110
      $region18: #{tpu_custom_call.1} parent=5 // pred_check_branch
        %113 = sbr.rel (%p111) target = $region20
      $region19: #{tpu_custom_call.1} parent=5 // pred_region
        // Predicated region
        $region21: #{tpu_custom_call.1} parent=19 // pred_check
          %p114 = pneg %p33
        $region22: #{tpu_custom_call.1} parent=19 // pred_check_branch
          %116 = sbr.rel (%p114) target = $region24
        $region23: #{tpu_custom_call.1} parent=19 // pred_region
          %s117 = sand.u32 %s23, 1
          %s118 = scalar_lea.sflag [#allocation4], %s117
          %s119 = sand.u32 %s23, 1
          %s120 = smul.addr %s119, 256
          %s121 = scalar_lea.vmem [#allocation3], %s120
          %s122 = smul.u32 16, %s13
          %124 = vsyncadd %s118, 0
          %s125 = smul.addr %s122, 2
          %s126 = smul.addr %s125, 8
          %s127 = scalar_lea.hbm %s0, %s126
          %s128 = sshll.u32 %s127, 4
          %s129 = int_to_ptr.hbm [resolvable:$true] %s128
          %s130 = sshll.u32 %s121, 4
          %s131 = int_to_ptr.vmem [resolvable:$true] %s130
          %136 = dma.hbm_to_vmem [thread:$0]  %s129, 4096, %s131, %s118, 256, 256, 16
        $region24: #{tpu_custom_call.1} parent=19 // pred_fallthru
          _
      $region20: #{tpu_custom_call.1} parent=5 // pred_fallthru
        _
      %p137 = scmp.le.s32.totalorder 1, %s13
      %p138 = scmp.lt.s32.totalorder %s13, 3
      %p139 = pnand %p137, %p138
      %p140 = pneg %p139
      // Predicated region
      $region25: #{tpu_custom_call.1} parent=5 // pred_check
        _
      $region26: #{tpu_custom_call.1} parent=5 // pred_check_branch
        %142 = sbr.rel (%p139) target = $region28
      $region27: #{tpu_custom_call.1} parent=5 // pred_region
        %s143 = ssub.s32 %s13, 1
        %s144 = sand.u32 %s26, 1
        %s145 = scalar_lea.sflag [#allocation4], %s144
        %s146 = sand.u32 %s26, 1
        %s147 = smul.addr %s146, 256
        %s148 = scalar_lea.vmem [#allocation3], %s147
        // Predicated region
        $region29: #{tpu_custom_call.1} parent=27 // pred_check
          %p149 = pneg %p39
        $region30: #{tpu_custom_call.1} parent=27 // pred_check_branch
          %151 = sbr.rel (%p149) target = $region32
        $region31: #{tpu_custom_call.1} parent=27 // pred_region
          %153 = dma.done %s145, 4096
        $region32: #{tpu_custom_call.1} parent=27 // pred_fallthru
          _
        // Predicated region
        $region33: #{tpu_custom_call.1} parent=27 // pred_check
          %p154 = pneg %p60
        $region34: #{tpu_custom_call.1} parent=27 // pred_check_branch
          %156 = sbr.rel (%p154) target = $region36
        $region35: #{tpu_custom_call.1} parent=27 // pred_region
          %158 = dma.done [#allocation7], 4096
        $region36: #{tpu_custom_call.1} parent=27 // pred_fallthru
          _
        %s159 = sand.u32 %s26, 1
        %s160 = scalar_lea.sflag [#allocation4], %s159
        %s161 = sand.u32 %s26, 1
        %s162 = smul.addr %s161, 256
        %s163 = scalar_lea.vmem [#allocation3], %s162
        %p164 = pneg %p39
        %p165 = pneg %p36
        %p166 = pneg %p60
        %p167 = pneg %p57
        %p168 = pneg %p81
        %p169 = pneg %p78
        %s170 = smul.u32 16, %s18
        %p171 = scmp.eq.s32.totalorder %s18, 0
        // Predicated region
        $region37: #{tpu_custom_call.1} parent=27 // pred_check
          %p172 = pneg %p171
        $region38: #{tpu_custom_call.1} parent=27 // pred_check_branch
          %174 = sbr.rel (%p172) target = $region40
        $region39: #{tpu_custom_call.1} parent=27 // pred_region
          %v175 = vlaneseq
          %vm176 = vcmp.ge.s32.totalorder %v175, 0
          %vm177 = vcmp.lt.s32.totalorder %v175, 256
          %vm178 = vmand %vm176, %vm177
          %179 = vst.msk [vmem:[#allocation2] sm:$0x3] %vm178, 0.0
        $region40: #{tpu_custom_call.1} parent=27 // pred_fallthru
          _
        %v180 = vld [vmem:[%s148] sm:$0xff]
        %v181 = vld [vmem:[%s148 + $0x8] sm:$0xff]
        %v182 = vld [vmem:[%s148 + $0x10] sm:$0xff]
        %v183 = vld [vmem:[%s148 + $0x18] sm:$0xff]
        %v184 = vld [vmem:[%s148 + $0x20] sm:$0xff]
        %v185 = vld [vmem:[%s148 + $0x28] sm:$0xff]
        %v186 = vld [vmem:[%s148 + $0x30] sm:$0xff]
        %v187 = vld [vmem:[%s148 + $0x38] sm:$0xff]
        %v188 = vld [vmem:[%s148 + $0x40] sm:$0xff]
        %v189 = vld [vmem:[%s148 + $0x48] sm:$0xff]
        %v190 = vld [vmem:[%s148 + $0x50] sm:$0xff]
        %v191 = vld [vmem:[%s148 + $0x58] sm:$0xff]
        %v192 = vld [vmem:[%s148 + $0x60] sm:$0xff]
        %v193 = vld [vmem:[%s148 + $0x68] sm:$0xff]
        %v194 = vld [vmem:[%s148 + $0x70] sm:$0xff]
        %v195 = vld [vmem:[%s148 + $0x78] sm:$0xff]
        %v196 = vld [vmem:[%s148 + $0x80] sm:$0xff]
        %v197 = vld [vmem:[%s148 + $0x88] sm:$0xff]
        %v198 = vld [vmem:[%s148 + $0x90] sm:$0xff]
        %v199 = vld [vmem:[%s148 + $0x98] sm:$0xff]
        %v200 = vld [vmem:[%s148 + $0xa0] sm:$0xff]
        %v201 = vld [vmem:[%s148 + $0xa8] sm:$0xff]
        %v202 = vld [vmem:[%s148 + $0xb0] sm:$0xff]
        %v203 = vld [vmem:[%s148 + $0xb8] sm:$0xff]
        %v204 = vld [vmem:[%s148 + $0xc0] sm:$0xff]
        %v205 = vld [vmem:[%s148 + $0xc8] sm:$0xff]
        %v206 = vld [vmem:[%s148 + $0xd0] sm:$0xff]
        %v207 = vld [vmem:[%s148 + $0xd8] sm:$0xff]
        %v208 = vld [vmem:[%s148 + $0xe0] sm:$0xff]
        %v209 = vld [vmem:[%s148 + $0xe8] sm:$0xff]
        %v210 = vld [vmem:[%s148 + $0xf0] sm:$0xff]
        %v211 = vld [vmem:[%s148 + $0xf8] sm:$0xff]
        %v212 = vadd.f32 %v180, %v181
        %213 = vadd.xlane.f32.xlu0 %v212
        %v214 = vpop.xlane.xlu0 %213
        %v215 = vadd.f32 %v182, %v183
        %216 = vadd.xlane.f32.xlu0 %v215
        %v217 = vpop.xlane.xlu0 %216
        %v218 = vadd.f32 %v184, %v185
        %219 = vadd.xlane.f32.xlu0 %v218
        %v220 = vpop.xlane.xlu0 %219
        %v221 = vadd.f32 %v186, %v187
        %222 = vadd.xlane.f32.xlu0 %v221
        %v223 = vpop.xlane.xlu0 %222
        %v224 = vadd.f32 %v188, %v189
        %225 = vadd.xlane.f32.xlu0 %v224
        %v226 = vpop.xlane.xlu0 %225
        %v227 = vadd.f32 %v190, %v191
        %228 = vadd.xlane.f32.xlu0 %v227
        %v229 = vpop.xlane.xlu0 %228
        %v230 = vadd.f32 %v192, %v193
        %231 = vadd.xlane.f32.xlu0 %v230
        %v232 = vpop.xlane.xlu0 %231
        %v233 = vadd.f32 %v194, %v195
        %234 = vadd.xlane.f32.xlu0 %v233
        %v235 = vpop.xlane.xlu0 %234
        %v236 = vadd.f32 %v196, %v197
        %237 = vadd.xlane.f32.xlu0 %v236
        %v238 = vpop.xlane.xlu0 %237
        %v239 = vadd.f32 %v198, %v199
        %240 = vadd.xlane.f32.xlu0 %v239
        %v241 = vpop.xlane.xlu0 %240
        %v242 = vadd.f32 %v200, %v201
        %243 = vadd.xlane.f32.xlu0 %v242
        %v244 = vpop.xlane.xlu0 %243
        %v245 = vadd.f32 %v202, %v203
        %246 = vadd.xlane.f32.xlu0 %v245
        %v247 = vpop.xlane.xlu0 %246
        %v248 = vadd.f32 %v204, %v205
        %249 = vadd.xlane.f32.xlu0 %v248
        %v250 = vpop.xlane.xlu0 %249
        %v251 = vadd.f32 %v206, %v207
        %252 = vadd.xlane.f32.xlu0 %v251
        %v253 = vpop.xlane.xlu0 %252
        %v254 = vadd.f32 %v208, %v209
        %255 = vadd.xlane.f32.xlu0 %v254
        %v256 = vpop.xlane.xlu0 %255
        %v257 = vadd.f32 %v210, %v211
        %258 = vadd.xlane.f32.xlu0 %v257
        %v259 = vpop.xlane.xlu0 %258
        %vm260 = vcmp.gt.f32.partialorder %v214, 0.0
        %vm261 = vcmp.gt.f32.partialorder %v217, 0.0
        %vm262 = vcmp.gt.f32.partialorder %v220, 0.0
        %vm263 = vcmp.gt.f32.partialorder %v223, 0.0
        %vm264 = vcmp.gt.f32.partialorder %v226, 0.0
        %vm265 = vcmp.gt.f32.partialorder %v229, 0.0
        %vm266 = vcmp.gt.f32.partialorder %v232, 0.0
        %vm267 = vcmp.gt.f32.partialorder %v235, 0.0
        %vm268 = vcmp.gt.f32.partialorder %v238, 0.0
        %vm269 = vcmp.gt.f32.partialorder %v241, 0.0
        %vm270 = vcmp.gt.f32.partialorder %v244, 0.0
        %vm271 = vcmp.gt.f32.partialorder %v247, 0.0
        %vm272 = vcmp.gt.f32.partialorder %v250, 0.0
        %vm273 = vcmp.gt.f32.partialorder %v253, 0.0
        %vm274 = vcmp.gt.f32.partialorder %v256, 0.0
        %vm275 = vcmp.gt.f32.partialorder %v259, 0.0
        %v276 = vrcp.pop %v214
        %v277 = vrcp.pop %v217
        %v278 = vrcp.pop %v220
        %v279 = vrcp.pop %v223
        %v280 = vrcp.pop %v226
        %v281 = vrcp.pop %v229
        %v282 = vrcp.pop %v232
        %v283 = vrcp.pop %v235
        %v284 = vrcp.pop %v238
        %v285 = vrcp.pop %v241
        %v286 = vrcp.pop %v244
        %v287 = vrcp.pop %v247
        %v288 = vrcp.pop %v250
        %v289 = vrcp.pop %v253
        %v290 = vrcp.pop %v256
        %v291 = vrcp.pop %v259
        %v292 = vsel %vm260, %v276, 0.0
        %v293 = vsel %vm261, %v277, 0.0
        %v294 = vsel %vm262, %v278, 0.0
        %v295 = vsel %vm263, %v279, 0.0
        %v296 = vsel %vm264, %v280, 0.0
        %v297 = vsel %vm265, %v281, 0.0
        %v298 = vsel %vm266, %v282, 0.0
        %v299 = vsel %vm267, %v283, 0.0
        %v300 = vsel %vm268, %v284, 0.0
        %v301 = vsel %vm269, %v285, 0.0
        %v302 = vsel %vm270, %v286, 0.0
        %v303 = vsel %vm271, %v287, 0.0
        %v304 = vsel %vm272, %v288, 0.0
        %v305 = vsel %vm273, %v289, 0.0
        %v306 = vsel %vm274, %v290, 0.0
        %v307 = vsel %vm275, %v291, 0.0
        %v308 = vmul.f32 %v292, 0.00390625
        %v309 = vmul.f32 %v293, 0.00390625
        %v310 = vmul.f32 %v294, 0.00390625
        %v311 = vmul.f32 %v295, 0.00390625
        %v312 = vmul.f32 %v296, 0.00390625
        %v313 = vmul.f32 %v297, 0.00390625
        %v314 = vmul.f32 %v298, 0.00390625
        %v315 = vmul.f32 %v299, 0.00390625
        %v316 = vmul.f32 %v300, 0.00390625
        %v317 = vmul.f32 %v301, 0.00390625
        %v318 = vmul.f32 %v302, 0.00390625
        %v319 = vmul.f32 %v303, 0.00390625
        %v320 = vmul.f32 %v304, 0.00390625
        %v321 = vmul.f32 %v305, 0.00390625
        %v322 = vmul.f32 %v306, 0.00390625
        %v323 = vmul.f32 %v307, 0.00390625
        %v324 = vld [vmem:[#allocation2] sm:$0x3]
        %v325 = vmul.f32 %v180, %v308
        %v326 = vmul.f32 %v181, %v308
        %v327 = vmul.f32 %v182, %v309
        %v328 = vmul.f32 %v183, %v309
        %v329 = vmul.f32 %v184, %v310
        %v330 = vmul.f32 %v185, %v310
        %v331 = vmul.f32 %v186, %v311
        %v332 = vmul.f32 %v187, %v311
        %v333 = vmul.f32 %v188, %v312
        %v334 = vmul.f32 %v189, %v312
        %v335 = vmul.f32 %v190, %v313
        %v336 = vmul.f32 %v191, %v313
        %v337 = vmul.f32 %v192, %v314
        %v338 = vmul.f32 %v193, %v314
        %v339 = vmul.f32 %v194, %v315
        %v340 = vmul.f32 %v195, %v315
        %v341 = vmul.f32 %v196, %v316
        %v342 = vmul.f32 %v197, %v316
        %v343 = vmul.f32 %v198, %v317
        %v344 = vmul.f32 %v199, %v317
        %v345 = vmul.f32 %v200, %v318
        %v346 = vmul.f32 %v201, %v318
        %v347 = vmul.f32 %v202, %v319
        %v348 = vmul.f32 %v203, %v319
        %v349 = vmul.f32 %v204, %v320
        %v350 = vmul.f32 %v205, %v320
        %v351 = vmul.f32 %v206, %v321
        %v352 = vmul.f32 %v207, %v321
        %v353 = vmul.f32 %v208, %v322
        %v354 = vmul.f32 %v209, %v322
        %v355 = vmul.f32 %v210, %v323
        %v356 = vmul.f32 %v211, %v323
        %v357 = vadd.f32 %v325, %v327
        %v358 = vadd.f32 %v357, %v329
        %v359 = vadd.f32 %v358, %v331
        %v360 = vadd.f32 %v359, %v333
        %v361 = vadd.f32 %v360, %v335
        %v362 = vadd.f32 %v361, %v337
        %v363 = vadd.f32 %v362, %v339
        %v364 = vadd.f32 %v363, %v341
        %v365 = vadd.f32 %v364, %v343
        %v366 = vadd.f32 %v365, %v345
        %v367 = vadd.f32 %v366, %v347
        %v368 = vadd.f32 %v367, %v349
        %v369 = vadd.f32 %v368, %v351
        %v370 = vadd.f32 %v369, %v353
        %v371 = vadd.f32 %v370, %v355
        %v372 = vrot.slane %v371, 4
        %v373 = vadd.f32 %v371, %v372
        %v374 = vrot.slane %v373, 2
        %v375 = vadd.f32 %v373, %v374
        %v376 = vrot.slane %v375, 1
        %v377 = vadd.f32 %v375, %v376
        %v378 = vadd.f32 %v326, %v328
        %v379 = vadd.f32 %v378, %v330
        %v380 = vadd.f32 %v379, %v332
        %v381 = vadd.f32 %v380, %v334
        %v382 = vadd.f32 %v381, %v336
        %v383 = vadd.f32 %v382, %v338
        %v384 = vadd.f32 %v383, %v340
        %v385 = vadd.f32 %v384, %v342
        %v386 = vadd.f32 %v385, %v344
        %v387 = vadd.f32 %v386, %v346
        %v388 = vadd.f32 %v387, %v348
        %v389 = vadd.f32 %v388, %v350
        %v390 = vadd.f32 %v389, %v352
        %v391 = vadd.f32 %v390, %v354
        %v392 = vadd.f32 %v391, %v356
        %v393 = vrot.slane %v392, 4
        %v394 = vadd.f32 %v392, %v393
        %v395 = vrot.slane %v394, 2
        %v396 = vadd.f32 %v394, %v395
        %v397 = vrot.slane %v396, 1
        %v398 = vadd.f32 %v396, %v397
        %v401 = vrot.slane %v398, 7
        %vm402 = vcmask 1040384
        %v403 = vsel %vm402, %v377, %v401
        %v405 = vadd.f32 %v324, %v403
        %v406 = vlaneseq
        %vm407 = vcmp.ge.s32.totalorder %v406, 0
        %vm408 = vcmp.lt.s32.totalorder %v406, 256
        %vm409 = vmand %vm407, %vm408
        %410 = vst.msk [vmem:[#allocation2] sm:$0x3] %vm409, %v405
        %p411 = scmp.eq.s32.totalorder %s18, 1
        // Predicated region
        $region41: #{tpu_custom_call.1} parent=27 // pred_check
          %p412 = pneg %p411
        $region42: #{tpu_custom_call.1} parent=27 // pred_check_branch
          %414 = sbr.rel (%p412) target = $region44
        $region43: #{tpu_custom_call.1} parent=27 // pred_region
          %v415 = vld [vmem:[#allocation2] sm:$0x3]
          %v416 = vld [vmem:[#allocation6] sm:$0xff]
          %v417 = vld [vmem:[#allocation6 + $0x8] sm:$0xff]
          %v418 = vld [vmem:[#allocation6 + $0x10] sm:$0xff]
          %v419 = vld [vmem:[#allocation6 + $0x18] sm:$0xff]
          %v420 = vld [vmem:[#allocation6 + $0x20] sm:$0xff]
          %v421 = vld [vmem:[#allocation6 + $0x28] sm:$0xff]
          %v422 = vld [vmem:[#allocation6 + $0x30] sm:$0xff]
          %v423 = vld [vmem:[#allocation6 + $0x38] sm:$0xff]
          %v424 = vld [vmem:[#allocation6 + $0x40] sm:$0xff]
          %v425 = vld [vmem:[#allocation6 + $0x48] sm:$0xff]
          %v426 = vld [vmem:[#allocation6 + $0x50] sm:$0xff]
          %v427 = vld [vmem:[#allocation6 + $0x58] sm:$0xff]
          %v428 = vld [vmem:[#allocation6 + $0x60] sm:$0xff]
          %v429 = vld [vmem:[#allocation6 + $0x68] sm:$0xff]
          %v430 = vld [vmem:[#allocation6 + $0x70] sm:$0xff]
          %v431 = vld [vmem:[#allocation6 + $0x78] sm:$0xff]
          %v432 = vld [vmem:[#allocation6 + $0x80] sm:$0xff]
          %v433 = vld [vmem:[#allocation6 + $0x88] sm:$0xff]
          %v434 = vld [vmem:[#allocation6 + $0x90] sm:$0xff]
          %v435 = vld [vmem:[#allocation6 + $0x98] sm:$0xff]
          %v436 = vld [vmem:[#allocation6 + $0xa0] sm:$0xff]
          %v437 = vld [vmem:[#allocation6 + $0xa8] sm:$0xff]
          %v438 = vld [vmem:[#allocation6 + $0xb0] sm:$0xff]
          %v439 = vld [vmem:[#allocation6 + $0xb8] sm:$0xff]
          %v440 = vld [vmem:[#allocation6 + $0xc0] sm:$0xff]
          %v441 = vld [vmem:[#allocation6 + $0xc8] sm:$0xff]
          %v442 = vld [vmem:[#allocation6 + $0xd0] sm:$0xff]
          %v443 = vld [vmem:[#allocation6 + $0xd8] sm:$0xff]
          %v444 = vld [vmem:[#allocation6 + $0xe0] sm:$0xff]
          %v445 = vld [vmem:[#allocation6 + $0xe8] sm:$0xff]
          %v446 = vld [vmem:[#allocation6 + $0xf0] sm:$0xff]
          %v447 = vld [vmem:[#allocation6 + $0xf8] sm:$0xff]
          %v449 = vperm.slane %v415, 0
          %v450 = vperm.slane %v415, 1
          %453 = vmatpush.msra.mxu0 %v431
          %454 = vmatpush.msra.mxu0 %v430
          %455 = vmatpush.msra.mxu0 %v429
          %456 = vmatpush.msra.mxu0 %v428
          %457 = vmatpush.msra.mxu0 %v427
          %458 = vmatpush.msra.mxu0 %v426
          %459 = vmatpush.msra.mxu0 %v425
          %460 = vmatpush.msra.mxu0 %v424
          %461 = vmatpush.msra.mxu0 %v423
          %462 = vmatpush.msra.mxu0 %v422
          %463 = vmatpush.msra.mxu0 %v421
          %464 = vmatpush.msra.mxu0 %v420
          %465 = vmatpush.msra.mxu0 %v419
          %466 = vmatpush.msra.mxu0 %v418
          %467 = vmatpush.msra.mxu0 %v417
          %468 = vmatpush.msra.mxu0 %v416
          %469 = vmatmul.f32.gmra.mxu0 %v449
          %v470 = vpop.f32.mrf.mxu0
          %v471 = vadd.f32 0.0, %v470
          %472 = vdwg.mxu0
          %473 = vmatpush.msra.mxu0 %v447
          %474 = vmatpush.msra.mxu0 %v446
          %475 = vmatpush.msra.mxu0 %v445
          %476 = vmatpush.msra.mxu0 %v444
          %477 = vmatpush.msra.mxu0 %v443
          %478 = vmatpush.msra.mxu0 %v442
          %479 = vmatpush.msra.mxu0 %v441
          %480 = vmatpush.msra.mxu0 %v440
          %481 = vmatpush.msra.mxu0 %v439
          %482 = vmatpush.msra.mxu0 %v438
          %483 = vmatpush.msra.mxu0 %v437
          %484 = vmatpush.msra.mxu0 %v436
          %485 = vmatpush.msra.mxu0 %v435
          %486 = vmatpush.msra.mxu0 %v434
          %487 = vmatpush.msra.mxu0 %v433
          %488 = vmatpush.msra.mxu0 %v432
          %489 = vmatmul.f32.gmra.mxu0 %v450
          %v490 = vpop.f32.mrf.mxu0
          %v491 = vadd.f32 %v471, %v490
          %492 = vdwg.mxu0
          %493 = vst [vmem:[#allocation8] sm:$0x1] %v491
        $region44: #{tpu_custom_call.1} parent=27 // pred_fallthru
          _
        // Predicated region
        $region45: #{tpu_custom_call.1} parent=27 // pred_check
          %p494 = pneg %p78
        $region46: #{tpu_custom_call.1} parent=27 // pred_check_branch
          %496 = sbr.rel (%p494) target = $region48
        $region47: #{tpu_custom_call.1} parent=27 // pred_region
          %498 = vsyncadd [#allocation5], 0
          %s500 = sshll.u32 [#allocation8], 4
          %s501 = int_to_ptr.vmem [resolvable:$true] %s500
          %s502 = sshll.u32 %s2, 4
          %s503 = int_to_ptr.hbm [resolvable:$true] %s502
          %505 = dma.vmem_to_hbm [thread:$0]  %s501, 16, %s503, [#allocation5]
        $region48: #{tpu_custom_call.1} parent=27 // pred_fallthru
          _
        // Predicated region
        $region49: #{tpu_custom_call.1} parent=27 // pred_check
          %p506 = pneg %p78
        $region50: #{tpu_custom_call.1} parent=27 // pred_check_branch
          %508 = sbr.rel (%p506) target = $region52
        $region51: #{tpu_custom_call.1} parent=27 // pred_region
          %510 = dma.done [#allocation5], 16
        $region52: #{tpu_custom_call.1} parent=27 // pred_fallthru
          _
      $region28: #{tpu_custom_call.1} parent=5 // pred_fallthru
        _
      %p511 = scmp.le.s32.totalorder 2, %s13
      // Predicated region
      $region53: #{tpu_custom_call.1} parent=5 // pred_check
        %p512 = pneg %p511
      $region54: #{tpu_custom_call.1} parent=5 // pred_check_branch
        %514 = sbr.rel (%p512) target = $region56
      $region55: #{tpu_custom_call.1} parent=5 // pred_region
        %s515 = ssub.s32 %s13, 2
      $region56: #{tpu_custom_call.1} parent=5 // pred_fallthru
        _
    $region6: #{tpu_custom_call.1} parent=1 // loop_footer
      %s17 = sadd.s32 1, %s13
    $region7: #{tpu_custom_call.1} parent=1 // loop_footer_branch
      %12 = sbr.rel target = $region3
    $region8: #{tpu_custom_call.1} parent=1 // loop_exit
      _
    %516 = vsyncpa [#allocation4], 1
    %s517 = scalar_lea.sflag [#allocation4], 1
    %518 = vsyncpa %s517, 1
    %519 = vsyncpa [#allocation7], 1
    %520 = vsyncpa [#allocation5], 1
    %s521 = scalar_lea.sflag [#allocation5], 1
    %522 = vsyncpa %s521, 1

</llo_original>
